<compile_context>
chip_gen: v6e
topology: v6e:2x2x1
jax: 0.10.0
libtpu: 0.0.40
codegen_flags: <defaults>
</compile_context>

<pallas_src>
import functools
import math

import jax
import jax.numpy as jnp
from jax import lax
from jax.experimental import pallas as pl
from jax.experimental.pallas import tpu as pltpu


def _mha_kernel(qkv_ref, wq_ref, wk_ref, wv_ref,
                bq_ref, bk_ref, bv_ref, wo_ref, bo_ref,
                o_ref, *, n_heads, d_model, q_len, kv_len):
    x = qkv_ref[0]                                    # (Lq + 2*Lk, E) bf16
    q = x[0:q_len, :]                                 # (Lq, E)
    k = x[q_len:q_len + kv_len, :]                    # (Lk, E)
    v = x[q_len + kv_len:, :]                         # (Lk, E)

    # Head-fused projections: one wide MXU matmul per projection, f32 acc.
    # q_normalizer is pre-folded into wq_ref / bq_ref in the wrapper.
    qp = jnp.dot(q, wq_ref[...], preferred_element_type=jnp.float32) + bq_ref[...]
    kp = jnp.dot(k, wk_ref[...], preferred_element_type=jnp.float32) + bk_ref[...]
    vp = jnp.dot(v, wv_ref[...], preferred_element_type=jnp.float32) + bv_ref[...]

    heads = []
    for h in range(n_heads):                          # tiny H: trace-time unroll
        sl = slice(h * d_model, (h + 1) * d_model)    # static lane slice
        qh = qp[:, sl].astype(jnp.bfloat16)           # (Lq, D)
        kh = kp[:, sl].astype(jnp.bfloat16)           # (Lk, D)
        vh = vp[:, sl].astype(jnp.bfloat16)           # (Lk, D)

        # Scores: contract head dim directly (no explicit transpose).
        s = lax.dot_general(qh, kh, (((1,), (1,)), ((), ())),
                            preferred_element_type=jnp.float32)   # (Lq, Lk)

        # Fused softmax (f32), reciprocal on the EUP slot.
        m = jnp.max(s, axis=-1, keepdims=True)
        p = jnp.exp(s - m)
        l = jnp.sum(p, axis=-1, keepdims=True)
        a = p * pl.reciprocal(l, approx=True)
        # TODO(synk): dropout is identity here (module default p=0.0 / eval).

        heads.append(jnp.dot(a.astype(jnp.bfloat16), vh,
                             preferred_element_type=jnp.float32))  # (Lq, D)

    # Recombine heads (head-major lanes) and apply O_proj in one matmul.
    o_cat = jnp.concatenate(heads, axis=1).astype(jnp.bfloat16)    # (Lq, H*D)
    out = jnp.dot(o_cat, wo_ref[...], preferred_element_type=jnp.float32)
    out = out + bo_ref[...]
    o_ref[0] = out.astype(o_ref.dtype)


def mh_attention(Q, K, V, Wq, bq, Wk, bk, Wv, bv, Wo, bo, *, n_heads, d_model):
    """Q: (B, Lq, E); K, V: (B, Lk, E).
    Wq/Wk/Wv: (H*D, E) PyTorch Linear weights; bq/bk/bv: (H*D,)
    Wo: (E, H*D); bo: (E,).  Returns (B, Lq, E) float32."""
    B, Lq, E = Q.shape
    _, Lk, _ = K.shape
    H, D = n_heads, d_model
    HD = H * D
    qn = 1.0 / math.sqrt(d_model)
    bf16, f32 = jnp.bfloat16, jnp.float32

    # Single activation slab (one DMA per batch step), bf16 MXU inputs.
    qkv = jnp.concatenate([Q, K, V], axis=1).astype(bf16)   # (B, Lq+2*Lk, E)

    # Pre-transposed, normalizer-folded weight slabs (head-major columns).
    wq_all = (qn * Wq).T.astype(bf16)          # (E, H*D)
    wk_all = Wk.T.astype(bf16)                 # (E, H*D)
    wv_all = Wv.T.astype(bf16)                 # (E, H*D)
    wo_all = Wo.T.astype(bf16)                 # (H*D, E)
    bq_all = (qn * bq).reshape(1, HD).astype(f32)
    bk_all = bk.reshape(1, HD).astype(f32)
    bv_all = bv.reshape(1, HD).astype(f32)
    bo_all = bo.reshape(1, E).astype(f32)

    kernel = functools.partial(_mha_kernel, n_heads=H, d_model=D,
                               q_len=Lq, kv_len=Lk)

    def const2(b):            # weights/biases: constant block -> never re-DMA'd
        return (0, 0)

    return pl.pallas_call(
        kernel,
        out_shape=jax.ShapeDtypeStruct((B, Lq, E), jnp.float32),
        grid_spec=pltpu.PrefetchScalarGridSpec(
            num_scalar_prefetch=0,
            grid=(B,),
            in_specs=[
                pl.BlockSpec((1, Lq + 2 * Lk, E), lambda b: (b, 0, 0)),  # QKV
                pl.BlockSpec((E, HD), const2),    # Wq (normalizer folded)
                pl.BlockSpec((E, HD), const2),    # Wk
                pl.BlockSpec((E, HD), const2),    # Wv
                pl.BlockSpec((1, HD), const2),    # bq (normalizer folded)
                pl.BlockSpec((1, HD), const2),    # bk
                pl.BlockSpec((1, HD), const2),    # bv
                pl.BlockSpec((HD, E), const2),    # Wo
                pl.BlockSpec((1, E), const2),     # bo
            ],
            out_specs=pl.BlockSpec((1, Lq, E), lambda b: (b, 0, 0)),
        ),
        compiler_params=pltpu.CompilerParams(
            dimension_semantics=("parallel",)),   # batch shards across TCs (v7x)
    )(qkv, wq_all, wk_all, wv_all, bq_all, bk_all, bv_all, wo_all, bo_all)


def _reference(Q, K, V, Wq, bq, Wk, bk, Wv, bv, Wo, bo, *, n_heads, d_model):
    """Pure-JAX f32 reference with identical semantics to the PyTorch module."""
    bs, q_len, _ = Q.shape
    _, kv_len, _ = K.shape
    qn = 1.0 / math.sqrt(d_model)
    Qp = qn * (Q @ Wq.T + bq)
    Kp = K @ Wk.T + bk
    Vp = V @ Wv.T + bv
    Qp = Qp.reshape(bs, q_len, n_heads, d_model)
    Kp = Kp.reshape(bs, kv_len, n_heads, d_model)
    Vp = Vp.reshape(bs, kv_len, n_heads, d_model)
    QK = jnp.einsum('nlhd,nshd->nhls', Qp, Kp)
    A = jax.nn.softmax(QK, axis=-1)      # dropout(p=0.0) == identity
    O = jnp.einsum('nhls,nshd->nlhd', A, Vp)
    return O.reshape(bs, q_len, n_heads * d_model) @ Wo.T + bo


if __name__ == "__main__":
    # Shapes consistent with MHAttentionLayer(emb_dim=32, d_model=16, n_heads=4)
    B, Lq, Lk, E, D, H = 2, 8, 8, 32, 16, 4

    key = jax.random.PRNGKey(0)
    keys = jax.random.split(key, 11)

    Q = jax.random.normal(keys[0], (B, Lq, E), jnp.float32)
    K = jax.random.normal(keys[1], (B, Lk, E), jnp.float32)
    V = jax.random.normal(keys[2], (B, Lk, E), jnp.float32)

    # PyTorch-like uniform init (bound = 1/sqrt(fan_in)).
    bound_in = 1.0 / math.sqrt(E)
    Wq = jax.random.uniform(keys[3], (H * D, E), jnp.float32, -bound_in, bound_in)
    bq = jax.random.uniform(keys[4], (H * D,), jnp.float32, -bound_in, bound_in)
    Wk = jax.random.uniform(keys[5], (H * D, E), jnp.float32, -bound_in, bound_in)
    bk = jax.random.uniform(keys[6], (H * D,), jnp.float32, -bound_in, bound_in)
    Wv = jax.random.uniform(keys[7], (H * D, E), jnp.float32, -bound_in, bound_in)
    bv = jax.random.uniform(keys[8], (H * D,), jnp.float32, -bound_in, bound_in)
    bound_o = 1.0 / math.sqrt(H * D)
    Wo = jax.random.uniform(keys[9], (E, H * D), jnp.float32, -bound_o, bound_o)
    bo = jax.random.uniform(keys[10], (E,), jnp.float32, -bound_o, bound_o)

    out = mh_attention(Q, K, V, Wq, bq, Wk, bk, Wv, bv, Wo, bo,
                       n_heads=H, d_model=D)
    out = jax.block_until_ready(out)

    ref = _reference(Q, K, V, Wq, bq, Wk, bk, Wv, bv, Wo, bo,
                     n_heads=H, d_model=D)
    assert out.shape == ref.shape == (B, Lq, E)
    max_err = jnp.max(jnp.abs(out - ref))
    # bf16 MXU inputs (f32 accumulation/softmax) -> relaxed tolerance vs the
    # pure-f32 reference, per the perf-review note.
    assert jnp.allclose(out, ref, atol=5e-2, rtol=5e-2), (
        f"max abs err = {max_err}")

    print("KERNEL_OK")
</pallas_src>

<mosaic_0001>
module attributes {stable_mosaic.version = 11 : i64} {
  func.func @_mha_kernel(%arg0: i32, %arg1: memref<1x24x32xbf16, #tpu.memory_space<vmem>>, %arg2: memref<32x64xbf16, #tpu.memory_space<vmem>>, %arg3: memref<32x64xbf16, #tpu.memory_space<vmem>>, %arg4: memref<32x64xbf16, #tpu.memory_space<vmem>>, %arg5: memref<1x64xf32, #tpu.memory_space<vmem>>, %arg6: memref<1x64xf32, #tpu.memory_space<vmem>>, %arg7: memref<1x64xf32, #tpu.memory_space<vmem>>, %arg8: memref<64x32xbf16, #tpu.memory_space<vmem>>, %arg9: memref<1x32xf32, #tpu.memory_space<vmem>>, %arg10: memref<1x8x32xf32, #tpu.memory_space<vmem>>) attributes {dimension_semantics = [#tpu.dimension_semantics<parallel>], iteration_bounds = array<i64: 2>, scalar_prefetch = 0 : i64, scratch_operands = 0 : i64, tpu.core_type = #tpu.core_type<tc>, window_params = [{transform_indices = @transform_0, window_bounds = array<i64: 1, 24, 32>}, {pipeline_mode = #tpu.pipeline_mode<synchronous>, transform_indices = @transform_1, window_bounds = array<i64: 32, 64>}, {pipeline_mode = #tpu.pipeline_mode<synchronous>, transform_indices = @transform_2, window_bounds = array<i64: 32, 64>}, {pipeline_mode = #tpu.pipeline_mode<synchronous>, transform_indices = @transform_3, window_bounds = array<i64: 32, 64>}, {pipeline_mode = #tpu.pipeline_mode<synchronous>, transform_indices = @transform_4, window_bounds = array<i64: 1, 64>}, {pipeline_mode = #tpu.pipeline_mode<synchronous>, transform_indices = @transform_5, window_bounds = array<i64: 1, 64>}, {pipeline_mode = #tpu.pipeline_mode<synchronous>, transform_indices = @transform_6, window_bounds = array<i64: 1, 64>}, {pipeline_mode = #tpu.pipeline_mode<synchronous>, transform_indices = @transform_7, window_bounds = array<i64: 64, 32>}, {pipeline_mode = #tpu.pipeline_mode<synchronous>, transform_indices = @transform_8, window_bounds = array<i64: 1, 32>}, {transform_indices = @transform_9, window_bounds = array<i64: 1, 8, 32>}]} {
    %c0 = arith.constant 0 : index
    %c0_0 = arith.constant 0 : index
    %c0_1 = arith.constant 0 : index
    %0 = vector.load %arg1[%c0, %c0_0, %c0_1] : memref<1x24x32xbf16, #tpu.memory_space<vmem>>, vector<1x24x32xbf16>
    %1 = vector.shape_cast %0 : vector<1x24x32xbf16> to vector<24x32xbf16>
    %2 = vector.extract_strided_slice %1 {offsets = [0, 0], sizes = [8, 32], strides = [1, 1]} : vector<24x32xbf16> to vector<8x32xbf16>
    %3 = vector.extract_strided_slice %1 {offsets = [8, 0], sizes = [8, 32], strides = [1, 1]} : vector<24x32xbf16> to vector<8x32xbf16>
    %4 = vector.extract_strided_slice %1 {offsets = [16, 0], sizes = [8, 32], strides = [1, 1]} : vector<24x32xbf16> to vector<8x32xbf16>
    %c0_2 = arith.constant 0 : index
    %c0_3 = arith.constant 0 : index
    %5 = vector.load %arg2[%c0_2, %c0_3] : memref<32x64xbf16, #tpu.memory_space<vmem>>, vector<32x64xbf16>
    %cst = arith.constant dense<0.000000e+00> : vector<8x64xf32>
    %6 = tpu.matmul %2, %5, %cst {dimension_numbers = #tpu.dot_dimension_numbers<[1], [0], [0], [1], [0, 0, 1, 1], [], []>} : vector<8x32xbf16>, vector<32x64xbf16>, vector<8x64xf32> -> vector<8x64xf32>
    %c0_4 = arith.constant 0 : index
    %c0_5 = arith.constant 0 : index
    %7 = vector.load %arg5[%c0_4, %c0_5] : memref<1x64xf32, #tpu.memory_space<vmem>>, vector<1x64xf32>
    %8 = vector.broadcast %7 : vector<1x64xf32> to vector<8x64xf32>
    %9 = arith.addf %6, %8 : vector<8x64xf32>
    %c0_6 = arith.constant 0 : index
    %c0_7 = arith.constant 0 : index
    %10 = vector.load %arg3[%c0_6, %c0_7] : memref<32x64xbf16, #tpu.memory_space<vmem>>, vector<32x64xbf16>
    %cst_8 = arith.constant dense<0.000000e+00> : vector<8x64xf32>
    %11 = tpu.matmul %3, %10, %cst_8 {dimension_numbers = #tpu.dot_dimension_numbers<[1], [0], [0], [1], [0, 0, 1, 1], [], []>} : vector<8x32xbf16>, vector<32x64xbf16>, vector<8x64xf32> -> vector<8x64xf32>
    %c0_9 = arith.constant 0 : index
    %c0_10 = arith.constant 0 : index
    %12 = vector.load %arg6[%c0_9, %c0_10] : memref<1x64xf32, #tpu.memory_space<vmem>>, vector<1x64xf32>
    %13 = vector.broadcast %12 : vector<1x64xf32> to vector<8x64xf32>
    %14 = arith.addf %11, %13 : vector<8x64xf32>
    %c0_11 = arith.constant 0 : index
    %c0_12 = arith.constant 0 : index
    %15 = vector.load %arg4[%c0_11, %c0_12] : memref<32x64xbf16, #tpu.memory_space<vmem>>, vector<32x64xbf16>
    %cst_13 = arith.constant dense<0.000000e+00> : vector<8x64xf32>
    %16 = tpu.matmul %4, %15, %cst_13 {dimension_numbers = #tpu.dot_dimension_numbers<[1], [0], [0], [1], [0, 0, 1, 1], [], []>} : vector<8x32xbf16>, vector<32x64xbf16>, vector<8x64xf32> -> vector<8x64xf32>
    %c0_14 = arith.constant 0 : index
    %c0_15 = arith.constant 0 : index
    %17 = vector.load %arg7[%c0_14, %c0_15] : memref<1x64xf32, #tpu.memory_space<vmem>>, vector<1x64xf32>
    %18 = vector.broadcast %17 : vector<1x64xf32> to vector<8x64xf32>
    %19 = arith.addf %16, %18 : vector<8x64xf32>
    %20 = vector.extract_strided_slice %9 {offsets = [0, 0], sizes = [8, 16], strides = [1, 1]} : vector<8x64xf32> to vector<8x16xf32>
    %21 = arith.truncf %20 : vector<8x16xf32> to vector<8x16xbf16>
    %22 = vector.extract_strided_slice %14 {offsets = [0, 0], sizes = [8, 16], strides = [1, 1]} : vector<8x64xf32> to vector<8x16xf32>
    %23 = arith.truncf %22 : vector<8x16xf32> to vector<8x16xbf16>
    %24 = vector.extract_strided_slice %19 {offsets = [0, 0], sizes = [8, 16], strides = [1, 1]} : vector<8x64xf32> to vector<8x16xf32>
    %25 = arith.truncf %24 : vector<8x16xf32> to vector<8x16xbf16>
    %cst_16 = arith.constant dense<0.000000e+00> : vector<8x8xf32>
    %26 = tpu.matmul %21, %23, %cst_16 {dimension_numbers = #tpu.dot_dimension_numbers<[1], [1], [0], [0], [0, 0, 1, 0], [], []>} : vector<8x16xbf16>, vector<8x16xbf16>, vector<8x8xf32> -> vector<8x8xf32>
    %cst_17 = arith.constant dense<0xFF800000> : vector<8xf32>
    %27 = vector.multi_reduction <maximumf>, %26, %cst_17 [1] : vector<8x8xf32> to vector<8xf32>
    %28 = vector.shape_cast %27 : vector<8xf32> to vector<8x1xf32>
    %29 = vector.broadcast %28 : vector<8x1xf32> to vector<8x8xf32>
    %30 = arith.subf %26, %29 : vector<8x8xf32>
    %31 = math.exp %30 : vector<8x8xf32>
    %cst_18 = arith.constant dense<0.000000e+00> : vector<8xf32>
    %32 = vector.multi_reduction <add>, %31, %cst_18 [1] : vector<8x8xf32> to vector<8xf32>
    %33 = vector.shape_cast %32 : vector<8xf32> to vector<8x1xf32>
    %34 = tpu.reciprocal %33 {approx = true} : vector<8x1xf32> -> vector<8x1xf32>
    %35 = vector.broadcast %34 : vector<8x1xf32> to vector<8x8xf32>
    %36 = arith.mulf %31, %35 : vector<8x8xf32>
    %37 = arith.truncf %36 : vector<8x8xf32> to vector<8x8xbf16>
    %cst_19 = arith.constant dense<0.000000e+00> : vector<8x16xf32>
    %38 = tpu.matmul %37, %25, %cst_19 {dimension_numbers = #tpu.dot_dimension_numbers<[1], [0], [0], [1], [0, 0, 1, 1], [], []>} : vector<8x8xbf16>, vector<8x16xbf16>, vector<8x16xf32> -> vector<8x16xf32>
    %39 = vector.extract_strided_slice %9 {offsets = [0, 16], sizes = [8, 16], strides = [1, 1]} : vector<8x64xf32> to vector<8x16xf32>
    %40 = arith.truncf %39 : vector<8x16xf32> to vector<8x16xbf16>
    %41 = vector.extract_strided_slice %14 {offsets = [0, 16], sizes = [8, 16], strides = [1, 1]} : vector<8x64xf32> to vector<8x16xf32>
    %42 = arith.truncf %41 : vector<8x16xf32> to vector<8x16xbf16>
    %43 = vector.extract_strided_slice %19 {offsets = [0, 16], sizes = [8, 16], strides = [1, 1]} : vector<8x64xf32> to vector<8x16xf32>
    %44 = arith.truncf %43 : vector<8x16xf32> to vector<8x16xbf16>
    %cst_20 = arith.constant dense<0.000000e+00> : vector<8x8xf32>
    %45 = tpu.matmul %40, %42, %cst_20 {dimension_numbers = #tpu.dot_dimension_numbers<[1], [1], [0], [0], [0, 0, 1, 0], [], []>} : vector<8x16xbf16>, vector<8x16xbf16>, vector<8x8xf32> -> vector<8x8xf32>
    %cst_21 = arith.constant dense<0xFF800000> : vector<8xf32>
    %46 = vector.multi_reduction <maximumf>, %45, %cst_21 [1] : vector<8x8xf32> to vector<8xf32>
    %47 = vector.shape_cast %46 : vector<8xf32> to vector<8x1xf32>
    %48 = vector.broadcast %47 : vector<8x1xf32> to vector<8x8xf32>
    %49 = arith.subf %45, %48 : vector<8x8xf32>
    %50 = math.exp %49 : vector<8x8xf32>
    %cst_22 = arith.constant dense<0.000000e+00> : vector<8xf32>
    %51 = vector.multi_reduction <add>, %50, %cst_22 [1] : vector<8x8xf32> to vector<8xf32>
    %52 = vector.shape_cast %51 : vector<8xf32> to vector<8x1xf32>
    %53 = tpu.reciprocal %52 {approx = true} : vector<8x1xf32> -> vector<8x1xf32>
    %54 = vector.broadcast %53 : vector<8x1xf32> to vector<8x8xf32>
    %55 = arith.mulf %50, %54 : vector<8x8xf32>
    %56 = arith.truncf %55 : vector<8x8xf32> to vector<8x8xbf16>
    %cst_23 = arith.constant dense<0.000000e+00> : vector<8x16xf32>
    %57 = tpu.matmul %56, %44, %cst_23 {dimension_numbers = #tpu.dot_dimension_numbers<[1], [0], [0], [1], [0, 0, 1, 1], [], []>} : vector<8x8xbf16>, vector<8x16xbf16>, vector<8x16xf32> -> vector<8x16xf32>
    %58 = vector.extract_strided_slice %9 {offsets = [0, 32], sizes = [8, 16], strides = [1, 1]} : vector<8x64xf32> to vector<8x16xf32>
    %59 = arith.truncf %58 : vector<8x16xf32> to vector<8x16xbf16>
    %60 = vector.extract_strided_slice %14 {offsets = [0, 32], sizes = [8, 16], strides = [1, 1]} : vector<8x64xf32> to vector<8x16xf32>
    %61 = arith.truncf %60 : vector<8x16xf32> to vector<8x16xbf16>
    %62 = vector.extract_strided_slice %19 {offsets = [0, 32], sizes = [8, 16], strides = [1, 1]} : vector<8x64xf32> to vector<8x16xf32>
    %63 = arith.truncf %62 : vector<8x16xf32> to vector<8x16xbf16>
    %cst_24 = arith.constant dense<0.000000e+00> : vector<8x8xf32>
    %64 = tpu.matmul %59, %61, %cst_24 {dimension_numbers = #tpu.dot_dimension_numbers<[1], [1], [0], [0], [0, 0, 1, 0], [], []>} : vector<8x16xbf16>, vector<8x16xbf16>, vector<8x8xf32> -> vector<8x8xf32>
    %cst_25 = arith.constant dense<0xFF800000> : vector<8xf32>
    %65 = vector.multi_reduction <maximumf>, %64, %cst_25 [1] : vector<8x8xf32> to vector<8xf32>
    %66 = vector.shape_cast %65 : vector<8xf32> to vector<8x1xf32>
    %67 = vector.broadcast %66 : vector<8x1xf32> to vector<8x8xf32>
    %68 = arith.subf %64, %67 : vector<8x8xf32>
    %69 = math.exp %68 : vector<8x8xf32>
    %cst_26 = arith.constant dense<0.000000e+00> : vector<8xf32>
    %70 = vector.multi_reduction <add>, %69, %cst_26 [1] : vector<8x8xf32> to vector<8xf32>
    %71 = vector.shape_cast %70 : vector<8xf32> to vector<8x1xf32>
    %72 = tpu.reciprocal %71 {approx = true} : vector<8x1xf32> -> vector<8x1xf32>
    %73 = vector.broadcast %72 : vector<8x1xf32> to vector<8x8xf32>
    %74 = arith.mulf %69, %73 : vector<8x8xf32>
    %75 = arith.truncf %74 : vector<8x8xf32> to vector<8x8xbf16>
    %cst_27 = arith.constant dense<0.000000e+00> : vector<8x16xf32>
    %76 = tpu.matmul %75, %63, %cst_27 {dimension_numbers = #tpu.dot_dimension_numbers<[1], [0], [0], [1], [0, 0, 1, 1], [], []>} : vector<8x8xbf16>, vector<8x16xbf16>, vector<8x16xf32> -> vector<8x16xf32>
    %77 = vector.extract_strided_slice %9 {offsets = [0, 48], sizes = [8, 16], strides = [1, 1]} : vector<8x64xf32> to vector<8x16xf32>
    %78 = arith.truncf %77 : vector<8x16xf32> to vector<8x16xbf16>
    %79 = vector.extract_strided_slice %14 {offsets = [0, 48], sizes = [8, 16], strides = [1, 1]} : vector<8x64xf32> to vector<8x16xf32>
    %80 = arith.truncf %79 : vector<8x16xf32> to vector<8x16xbf16>
    %81 = vector.extract_strided_slice %19 {offsets = [0, 48], sizes = [8, 16], strides = [1, 1]} : vector<8x64xf32> to vector<8x16xf32>
    %82 = arith.truncf %81 : vector<8x16xf32> to vector<8x16xbf16>
    %cst_28 = arith.constant dense<0.000000e+00> : vector<8x8xf32>
    %83 = tpu.matmul %78, %80, %cst_28 {dimension_numbers = #tpu.dot_dimension_numbers<[1], [1], [0], [0], [0, 0, 1, 0], [], []>} : vector<8x16xbf16>, vector<8x16xbf16>, vector<8x8xf32> -> vector<8x8xf32>
    %cst_29 = arith.constant dense<0xFF800000> : vector<8xf32>
    %84 = vector.multi_reduction <maximumf>, %83, %cst_29 [1] : vector<8x8xf32> to vector<8xf32>
    %85 = vector.shape_cast %84 : vector<8xf32> to vector<8x1xf32>
    %86 = vector.broadcast %85 : vector<8x1xf32> to vector<8x8xf32>
    %87 = arith.subf %83, %86 : vector<8x8xf32>
    %88 = math.exp %87 : vector<8x8xf32>
    %cst_30 = arith.constant dense<0.000000e+00> : vector<8xf32>
    %89 = vector.multi_reduction <add>, %88, %cst_30 [1] : vector<8x8xf32> to vector<8xf32>
    %90 = vector.shape_cast %89 : vector<8xf32> to vector<8x1xf32>
    %91 = tpu.reciprocal %90 {approx = true} : vector<8x1xf32> -> vector<8x1xf32>
    %92 = vector.broadcast %91 : vector<8x1xf32> to vector<8x8xf32>
    %93 = arith.mulf %88, %92 : vector<8x8xf32>
    %94 = arith.truncf %93 : vector<8x8xf32> to vector<8x8xbf16>
    %cst_31 = arith.constant dense<0.000000e+00> : vector<8x16xf32>
    %95 = tpu.matmul %94, %82, %cst_31 {dimension_numbers = #tpu.dot_dimension_numbers<[1], [0], [0], [1], [0, 0, 1, 1], [], []>} : vector<8x8xbf16>, vector<8x16xbf16>, vector<8x16xf32> -> vector<8x16xf32>
    %96 = tpu.concatenate %38, %57, %76, %95 in 1 : vector<8x16xf32>, vector<8x16xf32>, vector<8x16xf32>, vector<8x16xf32> -> vector<8x64xf32>
    %97 = arith.truncf %96 : vector<8x64xf32> to vector<8x64xbf16>
    %c0_32 = arith.constant 0 : index
    %c0_33 = arith.constant 0 : index
    %98 = vector.load %arg8[%c0_32, %c0_33] : memref<64x32xbf16, #tpu.memory_space<vmem>>, vector<64x32xbf16>
    %cst_34 = arith.constant dense<0.000000e+00> : vector<8x32xf32>
    %99 = tpu.matmul %97, %98, %cst_34 {dimension_numbers = #tpu.dot_dimension_numbers<[1], [0], [0], [1], [0, 0, 1, 1], [], []>} : vector<8x64xbf16>, vector<64x32xbf16>, vector<8x32xf32> -> vector<8x32xf32>
    %c0_35 = arith.constant 0 : index
    %c0_36 = arith.constant 0 : index
    %100 = vector.load %arg9[%c0_35, %c0_36] : memref<1x32xf32, #tpu.memory_space<vmem>>, vector<1x32xf32>
    %101 = vector.broadcast %100 : vector<1x32xf32> to vector<8x32xf32>
    %102 = arith.addf %99, %101 : vector<8x32xf32>
    %c0_37 = arith.constant 0 : index
    %c0_38 = arith.constant 0 : index
    %c0_39 = arith.constant 0 : index
    %103 = vector.load %arg10[%c0_37, %c0_38, %c0_39] : memref<1x8x32xf32, #tpu.memory_space<vmem>>, vector<1x8x32xf32>
    %104 = vector.shape_cast %103 : vector<1x8x32xf32> to vector<8x32xf32>
    %105 = vector.shape_cast %102 : vector<8x32xf32> to vector<1x8x32xf32>
    tpu.vector_store %arg10[%c0_37, %c0_38, %c0_39], %105 {strides = array<i32>} : memref<1x8x32xf32, #tpu.memory_space<vmem>>, vector<1x8x32xf32>,
    return
  }
  func.func @transform_0(%arg0: i32) -> (i32, i32, i32) {
    %c0_i32 = arith.constant 0 : i32
    %c0_i32_0 = arith.constant 0 : i32
    %c0_i32_1 = arith.constant 0 : i32
    return %arg0, %c0_i32, %c0_i32_0 : i32, i32, i32
  }
  func.func @transform_1(%arg0: i32) -> (i32, i32) {
    %c0_i32 = arith.constant 0 : i32
    %c0_i32_0 = arith.constant 0 : i32
    %c0_i32_1 = arith.constant 0 : i32
    return %c0_i32, %c0_i32_0 : i32, i32
  }
  func.func @transform_2(%arg0: i32) -> (i32, i32) {
    %c0_i32 = arith.constant 0 : i32
    %c0_i32_0 = arith.constant 0 : i32
    %c0_i32_1 = arith.constant 0 : i32
    return %c0_i32, %c0_i32_0 : i32, i32
  }
  func.func @transform_3(%arg0: i32) -> (i32, i32) {
    %c0_i32 = arith.constant 0 : i32
    %c0_i32_0 = arith.constant 0 : i32
    %c0_i32_1 = arith.constant 0 : i32
    return %c0_i32, %c0_i32_0 : i32, i32
  }
  func.func @transform_4(%arg0: i32) -> (i32, i32) {
    %c0_i32 = arith.constant 0 : i32
    %c0_i32_0 = arith.constant 0 : i32
    %c0_i32_1 = arith.constant 0 : i32
    return %c0_i32, %c0_i32_0 : i32, i32
  }
  func.func @transform_5(%arg0: i32) -> (i32, i32) {
    %c0_i32 = arith.constant 0 : i32
    %c0_i32_0 = arith.constant 0 : i32
    %c0_i32_1 = arith.constant 0 : i32
    return %c0_i32, %c0_i32_0 : i32, i32
  }
  func.func @transform_6(%arg0: i32) -> (i32, i32) {
    %c0_i32 = arith.constant 0 : i32
    %c0_i32_0 = arith.constant 0 : i32
    %c0_i32_1 = arith.constant 0 : i32
    return %c0_i32, %c0_i32_0 : i32, i32
  }
  func.func @transform_7(%arg0: i32) -> (i32, i32) {
    %c0_i32 = arith.constant 0 : i32
    %c0_i32_0 = arith.constant 0 : i32
    %c0_i32_1 = arith.constant 0 : i32
    return %c0_i32, %c0_i32_0 : i32, i32
  }
  func.func @transform_8(%arg0: i32) -> (i32, i32) {
    %c0_i32 = arith.constant 0 : i32
    %c0_i32_0 = arith.constant 0 : i32
    %c0_i32_1 = arith.constant 0 : i32
    return %c0_i32, %c0_i32_0 : i32, i32
  }
  func.func @transform_9(%arg0: i32) -> (i32, i32, i32) {
    %c0_i32 = arith.constant 0 : i32
    %c0_i32_0 = arith.constant 0 : i32
    %c0_i32_1 = arith.constant 0 : i32
    return %arg0, %c0_i32, %c0_i32_0 : i32, i32, i32
  }
}

</mosaic_0001>

<llo_original>
// kernel: tpu_custom_call.1
$region0: #{tpu_custom_call.1}
  #allocation0 [shape = 'u32[]', space=smem, size = 0x4, offset = 0x4, fixed_abs, tag = 'smem constant byte address 0x4 - core index']
  #allocation1 [shape = 'u32[144,128]{1,0:T(1,128)}', space=vmem, size = 0x12000, scoped, tag = 'internal scratch']
  %s0 = inlined_call_operand.vmem [shape: bf16[2,24,32], index: 0, kind: input, shape index: {}]
  %s1 = inlined_call_operand.vmem [shape: bf16[32,64], index: 1, kind: input, shape index: {}]
  %s2 = inlined_call_operand.hbm [shape: bf16[32,64], index: 2, kind: input, shape index: {}]
  %s3 = inlined_call_operand.hbm [shape: bf16[32,64], index: 3, kind: input, shape index: {}]
  %s4 = inlined_call_operand.vmem [shape: f32[1,64], index: 4, kind: input, shape index: {}]
  %s5 = inlined_call_operand.vmem [shape: f32[1,64], index: 5, kind: input, shape index: {}]
  %s6 = inlined_call_operand.vmem [shape: f32[1,64], index: 6, kind: input, shape index: {}]
  %s7 = inlined_call_operand.vmem [shape: bf16[64,32], index: 7, kind: input, shape index: {}]
  %s8 = inlined_call_operand.vmem [shape: f32[1,32], index: 8, kind: input, shape index: {}]
  %s9 = inlined_call_operand.hbm [shape: f32[2,8,32], index: 9, kind: output, shape index: {}]
  %s10 = sld [smem:[#allocation0]]
  $region77: #{tpu_custom_call.1} parent=0
    _
  %s12 = ssub.s32 1, %s10
  %s13 = scalar_select 0, %s12, %s10
  $region1: #{tpu_custom_call.1} parent=0
    #allocation2 [shape = 'u8[8192]{0}', space=vmem, size = 0x2000, scoped, tag = 'input window, operand 2, single buffered']
    #allocation3 [shape = 's32[2]{0}', space=sflag, size = 0x8, scoped, tag = 'scoped memory for tpu_custom_call.1']
    #allocation4 [shape = 's32[2]{0}', space=sflag, size = 0x8, scoped, tag = 'scoped memory for tpu_custom_call.1']
    #allocation5 [shape = 'u8[8192]{0}', space=vmem, size = 0x2000, scoped, tag = 'input window, operand 3, single buffered']
    #allocation6 [shape = 's32[1]{0}', space=sflag, size = 0x4, scoped, tag = 'scoped memory for tpu_custom_call.1']
    #allocation7 [shape = 'u8[8192]{0}', space=vmem, size = 0x2000, scoped, tag = 'output window, operand 0']
    %14 = vsyncpa [#allocation3], 0
    %15 = vsyncpa [#allocation6], 0
    %16 = vsyncpa [#allocation4], 0
    %s17 = scalar_lea.sflag [#allocation4], 1
    %18 = vsyncpa %s17, 0
    loop: start=0, step=1, limit=4
    $region2: #{tpu_custom_call.1} parent=1 // loop_pre_header
      _
    $region3: #{tpu_custom_call.1} parent=1 // loop_header
      %s20 = sphi 0, %s24
      %p21 = scmp.ge.s32.totalorder %s20, 4
      %s30 = sphi 0, %s32
      %s33 = sphi 0, %s30
      %s34 = sphi 0, %s33
      %s50 = sphi 0, %s34
      %s54 = sphi 0, %s54
      %s56 = sphi 0, %s54
      %s57 = sphi 0, %s56
      %s71 = sphi 0, %s57
      %s75 = sphi 0, %s75
      %s77 = sphi 0, %s75
      %s78 = sphi 0, %s77
      %s92 = sphi 0, %s78
      %s96 = sphi 0, %s96
      %s98 = sphi 0, %s96
      %s99 = sphi 0, %s98
      %s113 = sphi 0, %s99
      %s117 = sphi 0, %s117
      %s119 = sphi 0, %s117
      %s120 = sphi 0, %s119
      %s134 = sphi 0, %s120
      %s138 = sphi 0, %s138
      %s140 = sphi 0, %s138
      %s141 = sphi 0, %s140
      %s155 = sphi 0, %s141
      %s159 = sphi 0, %s159
      %s161 = sphi 0, %s159
      %s162 = sphi 0, %s161
      %s176 = sphi 0, %s162
      %s180 = sphi 0, %s180
      %s182 = sphi 0, %s180
      %s183 = sphi 0, %s182
      %s197 = sphi 0, %s183
      %s201 = sphi 0, %s201
      %s203 = sphi 0, %s201
      %s204 = sphi 0, %s203
      %s218 = sphi 0, %s204
      %s224 = sphi 0, %s226
      %s227 = sphi 0, %s224
      %s228 = sphi 0, %s227
      %s244 = sphi 0, %s228
    $region4: #{tpu_custom_call.1} parent=1 // loop_header_branch
      %23 = sbr.rel (%p21) target = $region8
    $region5: #{tpu_custom_call.1} parent=1 // loop_body
      %s25 = ssub.s32 %s20, 1
      %s26 = ssub.s32 %s20, 2
      %s27 = sadd.s32 %s20, 1
      %s28 = ssub.s32 %s20, %s27
      %p29 = scmp.eq.s32.totalorder %s28, 0
      %s31 = sadd.s32 %s30, 1
      %s32 = scalar_select %p29, %s30, %s31
      %p35 = pneg %p29
      %p36 = scmp.eq.s32.totalorder %s20, 1
      %p37 = por %p35, %p36
      %p38 = scmp.ne.s32.totalorder %s30, %s33
      %p39 = scmp.eq.s32.totalorder %s20, 0
      %p40 = por %p38, %p39
      %p41 = scmp.ne.s32.totalorder %s30, %s33
      %p42 = scmp.eq.s32.totalorder %s25, 1
      %p43 = por %p41, %p42
      %p44 = scmp.ne.s32.totalorder %s33, %s34
      %p45 = scmp.eq.s32.totalorder %s25, 0
      %p46 = por %p44, %p45
      %p47 = scmp.ne.s32.totalorder %s33, %s34
      %p48 = scmp.eq.s32.totalorder %s26, 1
      %p49 = por %p47, %p48
      %p51 = scmp.ne.s32.totalorder %s34, %s50
      %p52 = scmp.eq.s32.totalorder %s26, 0
      %p53 = por %p51, %p52
      %s55 = sadd.s32 %s54, 1
      %p58 = scmp.eq.s32.totalorder %s20, 1
      %p59 = scmp.ne.s32.totalorder %s54, %s56
      %p60 = scmp.eq.s32.totalorder %s20, 0
      %p61 = por %p59, %p60
      %p62 = scmp.ne.s32.totalorder %s54, %s56
      %p63 = scmp.eq.s32.totalorder %s25, 1
      %p64 = por %p62, %p63
      %p65 = scmp.ne.s32.totalorder %s56, %s57
      %p66 = scmp.eq.s32.totalorder %s25, 0
      %p67 = por %p65, %p66
      %p68 = scmp.ne.s32.totalorder %s56, %s57
      %p69 = scmp.eq.s32.totalorder %s26, 1
      %p70 = por %p68, %p69
      %p72 = scmp.ne.s32.totalorder %s57, %s71
      %p73 = scmp.eq.s32.totalorder %s26, 0
      %p74 = por %p72, %p73
      %s76 = sadd.s32 %s75, 1
      %p79 = scmp.eq.s32.totalorder %s20, 1
      %p80 = scmp.ne.s32.totalorder %s75, %s77
      %p81 = scmp.eq.s32.totalorder %s20, 0
      %p82 = por %p80, %p81
      %p83 = scmp.ne.s32.totalorder %s75, %s77
      %p84 = scmp.eq.s32.totalorder %s25, 1
      %p85 = por %p83, %p84
      %p86 = scmp.ne.s32.totalorder %s77, %s78
      %p87 = scmp.eq.s32.totalorder %s25, 0
      %p88 = por %p86, %p87
      %p89 = scmp.ne.s32.totalorder %s77, %s78
      %p90 = scmp.eq.s32.totalorder %s26, 1
      %p91 = por %p89, %p90
      %p93 = scmp.ne.s32.totalorder %s78, %s92
      %p94 = scmp.eq.s32.totalorder %s26, 0
      %p95 = por %p93, %p94
      %s97 = sadd.s32 %s96, 1
      %p100 = scmp.eq.s32.totalorder %s20, 1
      %p101 = scmp.ne.s32.totalorder %s96, %s98
      %p102 = scmp.eq.s32.totalorder %s20, 0
      %p103 = por %p101, %p102
      %p104 = scmp.ne.s32.totalorder %s96, %s98
      %p105 = scmp.eq.s32.totalorder %s25, 1
      %p106 = por %p104, %p105
      %p107 = scmp.ne.s32.totalorder %s98, %s99
      %p108 = scmp.eq.s32.totalorder %s25, 0
      %p109 = por %p107, %p108
      %p110 = scmp.ne.s32.totalorder %s98, %s99
      %p111 = scmp.eq.s32.totalorder %s26, 1
      %p112 = por %p110, %p111
      %p114 = scmp.ne.s32.totalorder %s99, %s113
      %p115 = scmp.eq.s32.totalorder %s26, 0
      %p116 = por %p114, %p115
      %s118 = sadd.s32 %s117, 1
      %p121 = scmp.eq.s32.totalorder %s20, 1
      %p122 = scmp.ne.s32.totalorder %s117, %s119
      %p123 = scmp.eq.s32.totalorder %s20, 0
      %p124 = por %p122, %p123
      %p125 = scmp.ne.s32.totalorder %s117, %s119
      %p126 = scmp.eq.s32.totalorder %s25, 1
      %p127 = por %p125, %p126
      %p128 = scmp.ne.s32.totalorder %s119, %s120
      %p129 = scmp.eq.s32.totalorder %s25, 0
      %p130 = por %p128, %p129
      %p131 = scmp.ne.s32.totalorder %s119, %s120
      %p132 = scmp.eq.s32.totalorder %s26, 1
      %p133 = por %p131, %p132
      %p135 = scmp.ne.s32.totalorder %s120, %s134
      %p136 = scmp.eq.s32.totalorder %s26, 0
      %p137 = por %p135, %p136
      %s139 = sadd.s32 %s138, 1
      %p142 = scmp.eq.s32.totalorder %s20, 1
      %p143 = scmp.ne.s32.totalorder %s138, %s140
      %p144 = scmp.eq.s32.totalorder %s20, 0
      %p145 = por %p143, %p144
      %p146 = scmp.ne.s32.totalorder %s138, %s140
      %p147 = scmp.eq.s32.totalorder %s25, 1
      %p148 = por %p146, %p147
      %p149 = scmp.ne.s32.totalorder %s140, %s141
      %p150 = scmp.eq.s32.totalorder %s25, 0
      %p151 = por %p149, %p150
      %p152 = scmp.ne.s32.totalorder %s140, %s141
      %p153 = scmp.eq.s32.totalorder %s26, 1
      %p154 = por %p152, %p153
      %p156 = scmp.ne.s32.totalorder %s141, %s155
      %p157 = scmp.eq.s32.totalorder %s26, 0
      %p158 = por %p156, %p157
      %s160 = sadd.s32 %s159, 1
      %p163 = scmp.eq.s32.totalorder %s20, 1
      %p164 = scmp.ne.s32.totalorder %s159, %s161
      %p165 = scmp.eq.s32.totalorder %s20, 0
      %p166 = por %p164, %p165
      %p167 = scmp.ne.s32.totalorder %s159, %s161
      %p168 = scmp.eq.s32.totalorder %s25, 1
      %p169 = por %p167, %p168
      %p170 = scmp.ne.s32.totalorder %s161, %s162
      %p171 = scmp.eq.s32.totalorder %s25, 0
      %p172 = por %p170, %p171
      %p173 = scmp.ne.s32.totalorder %s161, %s162
      %p174 = scmp.eq.s32.totalorder %s26, 1
      %p175 = por %p173, %p174
      %p177 = scmp.ne.s32.totalorder %s162, %s176
      %p178 = scmp.eq.s32.totalorder %s26, 0
      %p179 = por %p177, %p178
      %s181 = sadd.s32 %s180, 1
      %p184 = scmp.eq.s32.totalorder %s20, 1
      %p185 = scmp.ne.s32.totalorder %s180, %s182
      %p186 = scmp.eq.s32.totalorder %s20, 0
      %p187 = por %p185, %p186
      %p188 = scmp.ne.s32.totalorder %s180, %s182
      %p189 = scmp.eq.s32.totalorder %s25, 1
      %p190 = por %p188, %p189
      %p191 = scmp.ne.s32.totalorder %s182, %s183
      %p192 = scmp.eq.s32.totalorder %s25, 0
      %p193 = por %p191, %p192
      %p194 = scmp.ne.s32.totalorder %s182, %s183
      %p195 = scmp.eq.s32.totalorder %s26, 1
      %p196 = por %p194, %p195
      %p198 = scmp.ne.s32.totalorder %s183, %s197
      %p199 = scmp.eq.s32.totalorder %s26, 0
      %p200 = por %p198, %p199
      %s202 = sadd.s32 %s201, 1
      %p205 = scmp.eq.s32.totalorder %s20, 1
      %p206 = scmp.ne.s32.totalorder %s201, %s203
      %p207 = scmp.eq.s32.totalorder %s20, 0
      %p208 = por %p206, %p207
      %p209 = scmp.ne.s32.totalorder %s201, %s203
      %p210 = scmp.eq.s32.totalorder %s25, 1
      %p211 = por %p209, %p210
      %p212 = scmp.ne.s32.totalorder %s203, %s204
      %p213 = scmp.eq.s32.totalorder %s25, 0
      %p214 = por %p212, %p213
      %p215 = scmp.ne.s32.totalorder %s203, %s204
      %p216 = scmp.eq.s32.totalorder %s26, 1
      %p217 = por %p215, %p216
      %p219 = scmp.ne.s32.totalorder %s204, %s218
      %p220 = scmp.eq.s32.totalorder %s26, 0
      %p221 = por %p219, %p220
      %s222 = ssub.s32 %s20, %s27
      %p223 = scmp.eq.s32.totalorder %s222, 0
      %s225 = sadd.s32 %s224, 1
      %s226 = scalar_select %p223, %s224, %s225
      %p229 = pneg %p223
      %p230 = scmp.eq.s32.totalorder %s20, 1
      %p231 = por %p229, %p230
      %p232 = scmp.ne.s32.totalorder %s224, %s227
      %p233 = scmp.eq.s32.totalorder %s20, 0
      %p234 = por %p232, %p233
      %p235 = scmp.ne.s32.totalorder %s224, %s227
      %p236 = scmp.eq.s32.totalorder %s25, 1
      %p237 = por %p235, %p236
      %p238 = scmp.ne.s32.totalorder %s227, %s228
      %p239 = scmp.eq.s32.totalorder %s25, 0
      %p240 = por %p238, %p239
      %p241 = scmp.ne.s32.totalorder %s227, %s228
      %p242 = scmp.eq.s32.totalorder %s26, 1
      %p243 = por %p241, %p242
      %p245 = scmp.ne.s32.totalorder %s228, %s244
      %p246 = scmp.eq.s32.totalorder %s26, 0
      %p247 = por %p245, %p246
      %p248 = scmp.le.s32.totalorder 1, %s20
      %p249 = scmp.lt.s32.totalorder %s20, 3
      %p250 = pnand %p248, %p249
      %p251 = pneg %p250
      // Predicated region
      $region9: #{tpu_custom_call.1} parent=5 // pred_check
        _
      $region10: #{tpu_custom_call.1} parent=5 // pred_check_branch
        %253 = sbr.rel (%p250) target = $region12
      $region11: #{tpu_custom_call.1} parent=5 // pred_region
        %s254 = ssub.s32 %s20, 1
        // Predicated region
        $region13: #{tpu_custom_call.1} parent=11 // pred_check
          %p255 = pneg %p67
        $region14: #{tpu_custom_call.1} parent=11 // pred_check_branch
          %257 = sbr.rel (%p255) target = $region16
        $region15: #{tpu_custom_call.1} parent=11 // pred_region
          _
        $region16: #{tpu_custom_call.1} parent=11 // pred_fallthru
          _
        // Predicated region
        $region17: #{tpu_custom_call.1} parent=11 // pred_check
          %p258 = pneg %p88
        $region18: #{tpu_custom_call.1} parent=11 // pred_check_branch
          %260 = sbr.rel (%p258) target = $region20
        $region19: #{tpu_custom_call.1} parent=11 // pred_region
          %s262 = ssub.s32 256, 256
          %263 = vsyncadd [#allocation3], %s262
          %s264 = sshll.u32 [#allocation2], 4
          %s265 = int_to_ptr.vmem [resolvable:$true] %s264
          %270 = dma.hbm_to_vmem [thread:$0]  %s2, 256, %s265, [#allocation3], 64, 64, 4
        $region20: #{tpu_custom_call.1} parent=11 // pred_fallthru
          _
        // Predicated region
        $region21: #{tpu_custom_call.1} parent=11 // pred_check
          %p271 = pneg %p109
        $region22: #{tpu_custom_call.1} parent=11 // pred_check_branch
          %273 = sbr.rel (%p271) target = $region24
        $region23: #{tpu_custom_call.1} parent=11 // pred_region
          %s275 = ssub.s32 256, 256
          %276 = vsyncadd [#allocation6], %s275
          %s277 = sshll.u32 [#allocation5], 4
          %s278 = int_to_ptr.vmem [resolvable:$true] %s277
          %283 = dma.hbm_to_vmem [thread:$0]  %s3, 256, %s278, [#allocation6], 64, 64, 4
        $region24: #{tpu_custom_call.1} parent=11 // pred_fallthru
          _
        // Predicated region
        $region25: #{tpu_custom_call.1} parent=11 // pred_check
          %p284 = pneg %p130
        $region26: #{tpu_custom_call.1} parent=11 // pred_check_branch
          %286 = sbr.rel (%p284) target = $region28
        $region27: #{tpu_custom_call.1} parent=11 // pred_region
          _
        $region28: #{tpu_custom_call.1} parent=11 // pred_fallthru
          _
        // Predicated region
        $region29: #{tpu_custom_call.1} parent=11 // pred_check
          %p287 = pneg %p151
        $region30: #{tpu_custom_call.1} parent=11 // pred_check_branch
          %289 = sbr.rel (%p287) target = $region32
        $region31: #{tpu_custom_call.1} parent=11 // pred_region
          _
        $region32: #{tpu_custom_call.1} parent=11 // pred_fallthru
          _
        // Predicated region
        $region33: #{tpu_custom_call.1} parent=11 // pred_check
          %p290 = pneg %p172
        $region34: #{tpu_custom_call.1} parent=11 // pred_check_branch
          %292 = sbr.rel (%p290) target = $region36
        $region35: #{tpu_custom_call.1} parent=11 // pred_region
          _
        $region36: #{tpu_custom_call.1} parent=11 // pred_fallthru
          _
        // Predicated region
        $region37: #{tpu_custom_call.1} parent=11 // pred_check
          %p293 = pneg %p193
        $region38: #{tpu_custom_call.1} parent=11 // pred_check_branch
          %295 = sbr.rel (%p293) target = $region40
        $region39: #{tpu_custom_call.1} parent=11 // pred_region
          _
        $region40: #{tpu_custom_call.1} parent=11 // pred_fallthru
          _
        // Predicated region
        $region41: #{tpu_custom_call.1} parent=11 // pred_check
          %p296 = pneg %p214
        $region42: #{tpu_custom_call.1} parent=11 // pred_check_branch
          %298 = sbr.rel (%p296) target = $region44
        $region43: #{tpu_custom_call.1} parent=11 // pred_region
          _
        $region44: #{tpu_custom_call.1} parent=11 // pred_fallthru
          _
      $region12: #{tpu_custom_call.1} parent=5 // pred_fallthru
        _
      %p299 = scmp.lt.s32.totalorder %s20, 2
      // Predicated region
      $region45: #{tpu_custom_call.1} parent=5 // pred_check
        %p300 = pneg %p299
      $region46: #{tpu_custom_call.1} parent=5 // pred_check_branch
        %302 = sbr.rel (%p300) target = $region48
      $region47: #{tpu_custom_call.1} parent=5 // pred_region
        // Predicated region
        $region49: #{tpu_custom_call.1} parent=47 // pred_check
          %p303 = pneg %p40
        $region50: #{tpu_custom_call.1} parent=47 // pred_check_branch
          %305 = sbr.rel (%p303) target = $region52
        $region51: #{tpu_custom_call.1} parent=47 // pred_region
          %p306 = scmp.lt.s32.totalorder %s20, 1
          %s307 = scalar_select %p306, %s20, 1
          %s308 = smul.addr %s307, 3
          %s309 = smul.addr %s308, 4
          %s310 = scalar_lea.vmem %s0, %s309
        $region52: #{tpu_custom_call.1} parent=47 // pred_fallthru
          _
      $region48: #{tpu_custom_call.1} parent=5 // pred_fallthru
        _
      %p311 = scmp.le.s32.totalorder 1, %s20
      %p312 = scmp.lt.s32.totalorder %s20, 3
      %p313 = pnand %p311, %p312
      %p314 = pneg %p313
      // Predicated region
      $region53: #{tpu_custom_call.1} parent=5 // pred_check
        _
      $region54: #{tpu_custom_call.1} parent=5 // pred_check_branch
        %316 = sbr.rel (%p313) target = $region56
      $region55: #{tpu_custom_call.1} parent=5 // pred_region
        %s317 = ssub.s32 %s20, 1
        // Predicated region
        $region57: #{tpu_custom_call.1} parent=55 // pred_check
          %p318 = pneg %p88
        $region58: #{tpu_custom_call.1} parent=55 // pred_check_branch
          %320 = sbr.rel (%p318) target = $region60
        $region59: #{tpu_custom_call.1} parent=55 // pred_region
          %321 = dma.done [#allocation3], 256
        $region60: #{tpu_custom_call.1} parent=55 // pred_fallthru
          _
        // Predicated region
        $region61: #{tpu_custom_call.1} parent=55 // pred_check
          %p322 = pneg %p109
        $region62: #{tpu_custom_call.1} parent=55 // pred_check_branch
          %324 = sbr.rel (%p322) target = $region64
        $region63: #{tpu_custom_call.1} parent=55 // pred_region
          %325 = dma.done [#allocation6], 256
        $region64: #{tpu_custom_call.1} parent=55 // pred_fallthru
          _
        %p326 = scmp.lt.s32.totalorder %s25, 1
        %s327 = scalar_select %p326, %s25, 1
        %s328 = smul.addr %s327, 3
        %s329 = smul.addr %s328, 4
        %s330 = scalar_lea.vmem %s0, %s329
        %p331 = pneg %p46
        %p332 = pneg %p43
        %p333 = pneg %p67
        %p334 = pneg %p64
        %p335 = pneg %p88
        %p336 = pneg %p85
        %p337 = pneg %p109
        %p338 = pneg %p106
        %p339 = pneg %p130
        %p340 = pneg %p127
        %p341 = pneg %p151
        %p342 = pneg %p148
        %p343 = pneg %p172
        %p344 = pneg %p169
        %p345 = pneg %p193
        %p346 = pneg %p190
        %p347 = pneg %p214
        %p348 = pneg %p211
        %p349 = pneg %p240
        %p350 = pneg %p237
        %s351 = sand.u32 %s227, 1
        %s352 = scalar_lea.sflag [#allocation4], %s351
        %s353 = sand.u32 %s227, 1
        %s354 = smul.addr %s353, 8
        %s355 = scalar_lea.vmem [#allocation7], %s354
        %p356 = scmp.lt.s32.totalorder %s25, 1
        %s357 = scalar_select %p356, %s25, 1
        %s358 = smul.addr %s357, 3
        %s359 = smul.addr %s358, 4
        %s360 = scalar_lea.vmem %s0, %s359
        %v362 = vld [vmem:[%s360] sm:$0xf]
        %v363 = vld [vmem:[%s360 + $0x4] sm:$0xf]
        %v364 = vld [vmem:[%s360 + $0x8] sm:$0xf]
        %v365 = vld [vmem:[%s1] sm:$0xf]
        %v366 = vld [vmem:[%s1 + $0x4] sm:$0xf]
        %v367 = vld [vmem:[%s1 + $0x8] sm:$0xf]
        %v368 = vld [vmem:[%s1 + $0xc] sm:$0xf]
        %v369 = vld [vmem:[%s4] sm:$0x1]
        %v371 = vlaneseq
        %v372 = vshrl.u32 %v371, 7
        %v373 = vsub.s32 0, %v372
        %v374 = vrot.slane %v369, %v373
        %v380 = vunpack.c.l.b16 %v365
        %v381 = vunpack.c.l.b16 %v366
        %v382 = vunpack.c.l.b16 %v367
        %v383 = vunpack.c.l.b16 %v368
        %v384 = vpack.c.b16 %v381, %v380
        %v385 = vpack.c.b16 %v383, %v382
        %vm388 = vcmask 261120
        %v390 = vsel %vm388, %v362, 0
        %392 = vmatprep.subr.bf16.mxu0 0
        %393 = vmatpush1.bf16.msra.mxu0 0
        %394 = vmatprep.subr.bf16.mxu0 0
        %395 = vmatpush1.bf16.msra.mxu0 0
        %396 = vmatprep.subr.bf16.mxu0 0
        %397 = vmatpush1.bf16.msra.mxu0 0
        %398 = vmatprep.subr.bf16.mxu0 0
        %399 = vmatpush1.bf16.msra.mxu0 0
        %400 = vmatprep.subr.bf16.mxu0 0
        %401 = vmatpush1.bf16.msra.mxu0 0
        %402 = vmatprep.subr.bf16.mxu0 0
        %403 = vmatpush1.bf16.msra.mxu0 0
        %404 = vmatprep.subr.bf16.mxu0 0
        %405 = vmatpush1.bf16.msra.mxu0 %v385
        %406 = vmatprep.subr.bf16.mxu0 0
        %407 = vmatpush1.bf16.msra.mxu0 %v384
        %408 = vmatprep.subr.bf16.mxu0 0
        %409 = vmatpush2.bf16.msra.mxu0 0
        %410 = vmatprep.subr.bf16.mxu0 0
        %411 = vmatpush2.bf16.msra.mxu0 0
        %412 = vmatprep.subr.bf16.mxu0 0
        %413 = vmatpush2.bf16.msra.mxu0 0
        %414 = vmatprep.subr.bf16.mxu0 0
        %415 = vmatpush2.bf16.msra.mxu0 0
        %416 = vmatprep.subr.bf16.mxu0 0
        %417 = vmatpush2.bf16.msra.mxu0 0
        %418 = vmatprep.subr.bf16.mxu0 0
        %419 = vmatpush2.bf16.msra.mxu0 0
        %420 = vmatprep.subr.bf16.mxu0 0
        %421 = vmatpush2.bf16.msra.mxu0 0
        %422 = vmatprep.subr.bf16.mxu0 0
        %423 = vmatpush2.bf16.msra.mxu0 0
        %424 = vmatprep.mubr.bf16.mxu0 0
        %425 = vmatmul.mubr.bf16.gmra.mxu0 %v390
        %v426 = vpop.f32.mrf.mxu0
        %v427 = vadd.f32 %v374, %v426
        %v428 = vpop.f32.mrf.mxu0
        %v429 = vpop.f32.mrf.mxu0
        %v430 = vpop.f32.mrf.mxu0
        %431 = vdwg.mxu0
        %v432 = vld [vmem:[#allocation2] sm:$0xf]
        %v433 = vld [vmem:[#allocation2 + $0x4] sm:$0xf]
        %v434 = vld [vmem:[#allocation2 + $0x8] sm:$0xf]
        %v435 = vld [vmem:[#allocation2 + $0xc] sm:$0xf]
        %v436 = vld [vmem:[%s5] sm:$0x1]
        %v438 = vlaneseq
        %v439 = vshrl.u32 %v438, 7
        %v440 = vsub.s32 0, %v439
        %v441 = vrot.slane %v436, %v440
        %v447 = vunpack.c.l.b16 %v432
        %v448 = vunpack.c.l.b16 %v433
        %v449 = vunpack.c.l.b16 %v434
        %v450 = vunpack.c.l.b16 %v435
        %v451 = vpack.c.b16 %v448, %v447
        %v452 = vpack.c.b16 %v450, %v449
        %v456 = vsel %vm388, %v363, 0
        %458 = vmatprep.subr.bf16.mxu0 0
        %459 = vmatpush1.bf16.msra.mxu0 0
        %460 = vmatprep.subr.bf16.mxu0 0
        %461 = vmatpush1.bf16.msra.mxu0 0
        %462 = vmatprep.subr.bf16.mxu0 0
        %463 = vmatpush1.bf16.msra.mxu0 0
        %464 = vmatprep.subr.bf16.mxu0 0
        %465 = vmatpush1.bf16.msra.mxu0 0
        %466 = vmatprep.subr.bf16.mxu0 0
        %467 = vmatpush1.bf16.msra.mxu0 0
        %468 = vmatprep.subr.bf16.mxu0 0
        %469 = vmatpush1.bf16.msra.mxu0 0
        %470 = vmatprep.subr.bf16.mxu0 0
        %471 = vmatpush1.bf16.msra.mxu0 %v452
        %472 = vmatprep.subr.bf16.mxu0 0
        %473 = vmatpush1.bf16.msra.mxu0 %v451
        %474 = vmatprep.subr.bf16.mxu0 0
        %475 = vmatpush2.bf16.msra.mxu0 0
        %476 = vmatprep.subr.bf16.mxu0 0
        %477 = vmatpush2.bf16.msra.mxu0 0
        %478 = vmatprep.subr.bf16.mxu0 0
        %479 = vmatpush2.bf16.msra.mxu0 0
        %480 = vmatprep.subr.bf16.mxu0 0
        %481 = vmatpush2.bf16.msra.mxu0 0
        %482 = vmatprep.subr.bf16.mxu0 0
        %483 = vmatpush2.bf16.msra.mxu0 0
        %484 = vmatprep.subr.bf16.mxu0 0
        %485 = vmatpush2.bf16.msra.mxu0 0
        %486 = vmatprep.subr.bf16.mxu0 0
        %487 = vmatpush2.bf16.msra.mxu0 0
        %488 = vmatprep.subr.bf16.mxu0 0
        %489 = vmatpush2.bf16.msra.mxu0 0
        %490 = vmatprep.mubr.bf16.mxu0 0
        %491 = vmatmul.mubr.bf16.gmra.mxu0 %v456
        %v492 = vpop.f32.mrf.mxu0
        %v493 = vadd.f32 %v441, %v492
        %v494 = vpop.f32.mrf.mxu0
        %v495 = vpop.f32.mrf.mxu0
        %v496 = vpop.f32.mrf.mxu0
        %497 = vdwg.mxu0
        %v498 = vld [vmem:[#allocation5] sm:$0xf]
        %v499 = vld [vmem:[#allocation5 + $0x4] sm:$0xf]
        %v500 = vld [vmem:[#allocation5 + $0x8] sm:$0xf]
        %v501 = vld [vmem:[#allocation5 + $0xc] sm:$0xf]
        %v502 = vld [vmem:[%s6] sm:$0x1]
        %v504 = vlaneseq
        %v505 = vshrl.u32 %v504, 7
        %v506 = vsub.s32 0, %v505
        %v507 = vrot.slane %v502, %v506
        %v513 = vunpack.c.l.b16 %v498
        %v514 = vunpack.c.l.b16 %v499
        %v515 = vunpack.c.l.b16 %v500
        %v516 = vunpack.c.l.b16 %v501
        %v517 = vpack.c.b16 %v514, %v513
        %v518 = vpack.c.b16 %v516, %v515
        %v522 = vsel %vm388, %v364, 0
        %524 = vmatprep.subr.bf16.mxu0 0
        %525 = vmatpush1.bf16.msra.mxu0 0
        %526 = vmatprep.subr.bf16.mxu0 0
        %527 = vmatpush1.bf16.msra.mxu0 0
        %528 = vmatprep.subr.bf16.mxu0 0
        %529 = vmatpush1.bf16.msra.mxu0 0
        %530 = vmatprep.subr.bf16.mxu0 0
        %531 = vmatpush1.bf16.msra.mxu0 0
        %532 = vmatprep.subr.bf16.mxu0 0
        %533 = vmatpush1.bf16.msra.mxu0 0
        %534 = vmatprep.subr.bf16.mxu0 0
        %535 = vmatpush1.bf16.msra.mxu0 0
        %536 = vmatprep.subr.bf16.mxu0 0
        %537 = vmatpush1.bf16.msra.mxu0 %v518
        %538 = vmatprep.subr.bf16.mxu0 0
        %539 = vmatpush1.bf16.msra.mxu0 %v517
        %540 = vmatprep.subr.bf16.mxu0 0
        %541 = vmatpush2.bf16.msra.mxu0 0
        %542 = vmatprep.subr.bf16.mxu0 0
        %543 = vmatpush2.bf16.msra.mxu0 0
        %544 = vmatprep.subr.bf16.mxu0 0
        %545 = vmatpush2.bf16.msra.mxu0 0
        %546 = vmatprep.subr.bf16.mxu0 0
        %547 = vmatpush2.bf16.msra.mxu0 0
        %548 = vmatprep.subr.bf16.mxu0 0
        %549 = vmatpush2.bf16.msra.mxu0 0
        %550 = vmatprep.subr.bf16.mxu0 0
        %551 = vmatpush2.bf16.msra.mxu0 0
        %552 = vmatprep.subr.bf16.mxu0 0
        %553 = vmatpush2.bf16.msra.mxu0 0
        %554 = vmatprep.subr.bf16.mxu0 0
        %555 = vmatpush2.bf16.msra.mxu0 0
        %556 = vmatprep.mubr.bf16.mxu0 0
        %557 = vmatmul.mubr.bf16.gmra.mxu0 %v522
        %v558 = vpop.f32.mrf.mxu0
        %v559 = vadd.f32 %v507, %v558
        %v560 = vpop.f32.mrf.mxu0
        %v561 = vpop.f32.mrf.mxu0
        %v562 = vpop.f32.mrf.mxu0
        %563 = vdwg.mxu0
        %v564 = vpack.c.bf16 %v427, %v427
        %v565 = vpack.c.bf16 %v493, %v493
        %v566 = vpack.c.bf16 %v559, %v559
        %vm567 = vcmask 130048
        %v569 = vsel %vm567, %v564, 0
        %v572 = vsel %vm567, %v565, 0
        %574 = vmatprep.subr.bf16.mxu0 0
        %575 = vmatpush1.bf16.xpose.msra.mxu0 0
        %576 = vmatprep.subr.bf16.mxu0 0
        %577 = vmatpush1.bf16.xpose.msra.mxu0 0
        %578 = vmatprep.subr.bf16.mxu0 0
        %579 = vmatpush1.bf16.xpose.msra.mxu0 0
        %580 = vmatprep.subr.bf16.mxu0 0
        %581 = vmatpush1.bf16.xpose.msra.mxu0 0
        %582 = vmatprep.subr.bf16.mxu0 0
        %583 = vmatpush1.bf16.xpose.msra.mxu0 0
        %584 = vmatprep.subr.bf16.mxu0 0
        %585 = vmatpush1.bf16.xpose.msra.mxu0 0
        %586 = vmatprep.subr.bf16.mxu0 0
        %587 = vmatpush1.bf16.xpose.msra.mxu0 0
        %588 = vmatprep.subr.bf16.mxu0 0
        %589 = vmatpush1.bf16.xpose.msra.mxu0 %v572
        %590 = vmatprep.subr.bf16.mxu0 0
        %591 = vmatpush2.bf16.xpose.msra.mxu0 0
        %592 = vmatprep.subr.bf16.mxu0 0
        %593 = vmatpush2.bf16.xpose.msra.mxu0 0
        %594 = vmatprep.subr.bf16.mxu0 0
        %595 = vmatpush2.bf16.xpose.msra.mxu0 0
        %596 = vmatprep.subr.bf16.mxu0 0
        %597 = vmatpush2.bf16.xpose.msra.mxu0 0
        %598 = vmatprep.subr.bf16.mxu0 0
        %599 = vmatpush2.bf16.xpose.msra.mxu0 0
        %600 = vmatprep.subr.bf16.mxu0 0
        %601 = vmatpush2.bf16.xpose.msra.mxu0 0
        %602 = vmatprep.subr.bf16.mxu0 0
        %603 = vmatpush2.bf16.xpose.msra.mxu0 0
        %604 = vmatprep.subr.bf16.mxu0 0
        %605 = vmatpush2.bf16.xpose.msra.mxu0 0
        %606 = vmatprep.mubr.bf16.mxu0 0
        %607 = vmatmul.mubr.bf16.gmra.mxu0 %v569
        %v608 = vpop.f32.mrf.mxu0
        %v609 = vadd.f32 0.0, %v608
        %v610 = vpop.f32.mrf.mxu0
        %v611 = vpop.f32.mrf.mxu0
        %v612 = vpop.f32.mrf.mxu0
        %613 = vdwg.mxu0
        %vm614 = vcmask 64512
        %v615 = vsel %vm614, %v609, -inf
        %616 = vmax.xlane.f32.xlu0 %v615
        %v617 = vpop.xlane.xlu0 %616
        %v618 = vsub.f32 %v609, %v617
        %v619 = vmul.f32 %v618, 1.442695
        %v620 = vpow.pop %v619
        %v621 = vsel %vm614, %v620, 0.0
        %622 = vadd.xlane.f32.xlu0 %v621
        %v623 = vpop.xlane.xlu0 %622
        %v624 = vrcp.pop %v623
        %v625 = vmul.f32 %v620, %v624
        %v626 = vpack.c.bf16 %v625, %v625
        %v628 = vsel %vm614, %v626, 0
        %vm630 = vcmask 1043456
        %v632 = vsel %vm630, %v566, 0
        %634 = vmatprep.subr.bf16.mxu0 0
        %635 = vmatpush1.bf16.msra.mxu0 0
        %636 = vmatprep.subr.bf16.mxu0 0
        %637 = vmatpush1.bf16.msra.mxu0 0
        %638 = vmatprep.subr.bf16.mxu0 0
        %639 = vmatpush1.bf16.msra.mxu0 0
        %640 = vmatprep.subr.bf16.mxu0 0
        %641 = vmatpush1.bf16.msra.mxu0 0
        %642 = vmatprep.subr.bf16.mxu0 0
        %643 = vmatpush1.bf16.msra.mxu0 0
        %644 = vmatprep.subr.bf16.mxu0 0
        %645 = vmatpush1.bf16.msra.mxu0 0
        %646 = vmatprep.subr.bf16.mxu0 0
        %647 = vmatpush1.bf16.msra.mxu0 0
        %648 = vmatprep.subr.bf16.mxu0 0
        %649 = vmatpush1.bf16.msra.mxu0 %v632
        %650 = vmatprep.subr.bf16.mxu0 0
        %651 = vmatpush2.bf16.msra.mxu0 0
        %652 = vmatprep.subr.bf16.mxu0 0
        %653 = vmatpush2.bf16.msra.mxu0 0
        %654 = vmatprep.subr.bf16.mxu0 0
        %655 = vmatpush2.bf16.msra.mxu0 0
        %656 = vmatprep.subr.bf16.mxu0 0
        %657 = vmatpush2.bf16.msra.mxu0 0
        %658 = vmatprep.subr.bf16.mxu0 0
        %659 = vmatpush2.bf16.msra.mxu0 0
        %660 = vmatprep.subr.bf16.mxu0 0
        %661 = vmatpush2.bf16.msra.mxu0 0
        %662 = vmatprep.subr.bf16.mxu0 0
        %663 = vmatpush2.bf16.msra.mxu0 0
        %664 = vmatprep.subr.bf16.mxu0 0
        %665 = vmatpush2.bf16.msra.mxu0 0
        %666 = vmatprep.mubr.bf16.mxu0 0
        %667 = vmatmul.mubr.bf16.gmra.mxu0 %v628
        %v668 = vpop.f32.mrf.mxu0
        %v669 = vadd.f32 0.0, %v668
        %v670 = vpop.f32.mrf.mxu0
        %v671 = vpop.f32.mrf.mxu0
        %v672 = vpop.f32.mrf.mxu0
        %673 = vdwg.mxu0
        %675 = vrot.lane.b32.xlu0 %v564, 112
        %v676 = vpop.permute.xlu0 %675
        %678 = vrot.lane.b32.xlu0 %v565, 112
        %v679 = vpop.permute.xlu0 %678
        %v681 = vsel %vm567, %v676, 0
        %v684 = vsel %vm567, %v679, 0
        %686 = vmatprep.subr.bf16.mxu0 0
        %687 = vmatpush1.bf16.xpose.msra.mxu0 0
        %688 = vmatprep.subr.bf16.mxu0 0
        %689 = vmatpush1.bf16.xpose.msra.mxu0 0
        %690 = vmatprep.subr.bf16.mxu0 0
        %691 = vmatpush1.bf16.xpose.msra.mxu0 0
        %692 = vmatprep.subr.bf16.mxu0 0
        %693 = vmatpush1.bf16.xpose.msra.mxu0 0
        %694 = vmatprep.subr.bf16.mxu0 0
        %695 = vmatpush1.bf16.xpose.msra.mxu0 0
        %696 = vmatprep.subr.bf16.mxu0 0
        %697 = vmatpush1.bf16.xpose.msra.mxu0 0
        %698 = vmatprep.subr.bf16.mxu0 0
        %699 = vmatpush1.bf16.xpose.msra.mxu0 0
        %700 = vmatprep.subr.bf16.mxu0 0
        %701 = vmatpush1.bf16.xpose.msra.mxu0 %v684
        %702 = vmatprep.subr.bf16.mxu0 0
        %703 = vmatpush2.bf16.xpose.msra.mxu0 0
        %704 = vmatprep.subr.bf16.mxu0 0
        %705 = vmatpush2.bf16.xpose.msra.mxu0 0
        %706 = vmatprep.subr.bf16.mxu0 0
        %707 = vmatpush2.bf16.xpose.msra.mxu0 0
        %708 = vmatprep.subr.bf16.mxu0 0
        %709 = vmatpush2.bf16.xpose.msra.mxu0 0
        %710 = vmatprep.subr.bf16.mxu0 0
        %711 = vmatpush2.bf16.xpose.msra.mxu0 0
        %712 = vmatprep.subr.bf16.mxu0 0
        %713 = vmatpush2.bf16.xpose.msra.mxu0 0
        %714 = vmatprep.subr.bf16.mxu0 0
        %715 = vmatpush2.bf16.xpose.msra.mxu0 0
        %716 = vmatprep.subr.bf16.mxu0 0
        %717 = vmatpush2.bf16.xpose.msra.mxu0 0
        %718 = vmatprep.mubr.bf16.mxu0 0
        %719 = vmatmul.mubr.bf16.gmra.mxu0 %v681
        %v720 = vpop.f32.mrf.mxu0
        %v721 = vadd.f32 0.0, %v720
        %v722 = vpop.f32.mrf.mxu0
        %v723 = vpop.f32.mrf.mxu0
        %v724 = vpop.f32.mrf.mxu0
        %725 = vdwg.mxu0
        %v726 = vsel %vm614, %v721, -inf
        %727 = vmax.xlane.f32.xlu0 %v726
        %v728 = vpop.xlane.xlu0 %727
        %v729 = vsub.f32 %v721, %v728
        %v730 = vmul.f32 %v729, 1.442695
        %v731 = vpow.pop %v730
        %v732 = vsel %vm614, %v731, 0.0
        %733 = vadd.xlane.f32.xlu0 %v732
        %v734 = vpop.xlane.xlu0 %733
        %v735 = vrcp.pop %v734
        %v736 = vmul.f32 %v731, %v735
        %v737 = vpack.c.bf16 %v736, %v736
        %739 = vrot.lane.b32.xlu0 %v566, 112
        %v740 = vpop.permute.xlu0 %739
        %v742 = vsel %vm614, %v737, 0
        %v745 = vsel %vm630, %v740, 0
        %747 = vmatprep.subr.bf16.mxu0 0
        %748 = vmatpush1.bf16.msra.mxu0 0
        %749 = vmatprep.subr.bf16.mxu0 0
        %750 = vmatpush1.bf16.msra.mxu0 0
        %751 = vmatprep.subr.bf16.mxu0 0
        %752 = vmatpush1.bf16.msra.mxu0 0
        %753 = vmatprep.subr.bf16.mxu0 0
        %754 = vmatpush1.bf16.msra.mxu0 0
        %755 = vmatprep.subr.bf16.mxu0 0
        %756 = vmatpush1.bf16.msra.mxu0 0
        %757 = vmatprep.subr.bf16.mxu0 0
        %758 = vmatpush1.bf16.msra.mxu0 0
        %759 = vmatprep.subr.bf16.mxu0 0
        %760 = vmatpush1.bf16.msra.mxu0 0
        %761 = vmatprep.subr.bf16.mxu0 0
        %762 = vmatpush1.bf16.msra.mxu0 %v745
        %763 = vmatprep.subr.bf16.mxu0 0
        %764 = vmatpush2.bf16.msra.mxu0 0
        %765 = vmatprep.subr.bf16.mxu0 0
        %766 = vmatpush2.bf16.msra.mxu0 0
        %767 = vmatprep.subr.bf16.mxu0 0
        %768 = vmatpush2.bf16.msra.mxu0 0
        %769 = vmatprep.subr.bf16.mxu0 0
        %770 = vmatpush2.bf16.msra.mxu0 0
        %771 = vmatprep.subr.bf16.mxu0 0
        %772 = vmatpush2.bf16.msra.mxu0 0
        %773 = vmatprep.subr.bf16.mxu0 0
        %774 = vmatpush2.bf16.msra.mxu0 0
        %775 = vmatprep.subr.bf16.mxu0 0
        %776 = vmatpush2.bf16.msra.mxu0 0
        %777 = vmatprep.subr.bf16.mxu0 0
        %778 = vmatpush2.bf16.msra.mxu0 0
        %779 = vmatprep.mubr.bf16.mxu0 0
        %780 = vmatmul.mubr.bf16.gmra.mxu0 %v742
        %v781 = vpop.f32.mrf.mxu0
        %v782 = vadd.f32 0.0, %v781
        %v783 = vpop.f32.mrf.mxu0
        %v784 = vpop.f32.mrf.mxu0
        %v785 = vpop.f32.mrf.mxu0
        %786 = vdwg.mxu0
        %787 = vrot.lane.b32.xlu0 %v564, 96
        %v788 = vpop.permute.xlu0 %787
        %789 = vrot.lane.b32.xlu0 %v565, 96
        %v790 = vpop.permute.xlu0 %789
        %v792 = vsel %vm567, %v788, 0
        %v795 = vsel %vm567, %v790, 0
        %797 = vmatprep.subr.bf16.mxu0 0
        %798 = vmatpush1.bf16.xpose.msra.mxu0 0
        %799 = vmatprep.subr.bf16.mxu0 0
        %800 = vmatpush1.bf16.xpose.msra.mxu0 0
        %801 = vmatprep.subr.bf16.mxu0 0
        %802 = vmatpush1.bf16.xpose.msra.mxu0 0
        %803 = vmatprep.subr.bf16.mxu0 0
        %804 = vmatpush1.bf16.xpose.msra.mxu0 0
        %805 = vmatprep.subr.bf16.mxu0 0
        %806 = vmatpush1.bf16.xpose.msra.mxu0 0
        %807 = vmatprep.subr.bf16.mxu0 0
        %808 = vmatpush1.bf16.xpose.msra.mxu0 0
        %809 = vmatprep.subr.bf16.mxu0 0
        %810 = vmatpush1.bf16.xpose.msra.mxu0 0
        %811 = vmatprep.subr.bf16.mxu0 0
        %812 = vmatpush1.bf16.xpose.msra.mxu0 %v795
        %813 = vmatprep.subr.bf16.mxu0 0
        %814 = vmatpush2.bf16.xpose.msra.mxu0 0
        %815 = vmatprep.subr.bf16.mxu0 0
        %816 = vmatpush2.bf16.xpose.msra.mxu0 0
        %817 = vmatprep.subr.bf16.mxu0 0
        %818 = vmatpush2.bf16.xpose.msra.mxu0 0
        %819 = vmatprep.subr.bf16.mxu0 0
        %820 = vmatpush2.bf16.xpose.msra.mxu0 0
        %821 = vmatprep.subr.bf16.mxu0 0
        %822 = vmatpush2.bf16.xpose.msra.mxu0 0
        %823 = vmatprep.subr.bf16.mxu0 0
        %824 = vmatpush2.bf16.xpose.msra.mxu0 0
        %825 = vmatprep.subr.bf16.mxu0 0
        %826 = vmatpush2.bf16.xpose.msra.mxu0 0
        %827 = vmatprep.subr.bf16.mxu0 0
        %828 = vmatpush2.bf16.xpose.msra.mxu0 0
        %829 = vmatprep.mubr.bf16.mxu0 0
        %830 = vmatmul.mubr.bf16.gmra.mxu0 %v792
        %v831 = vpop.f32.mrf.mxu0
        %v832 = vadd.f32 0.0, %v831
        %v833 = vpop.f32.mrf.mxu0
        %v834 = vpop.f32.mrf.mxu0
        %v835 = vpop.f32.mrf.mxu0
        %836 = vdwg.mxu0
        %v837 = vsel %vm614, %v832, -inf
        %838 = vmax.xlane.f32.xlu0 %v837
        %v839 = vpop.xlane.xlu0 %838
        %v840 = vsub.f32 %v832, %v839
        %v841 = vmul.f32 %v840, 1.442695
        %v842 = vpow.pop %v841
        %v843 = vsel %vm614, %v842, 0.0
        %844 = vadd.xlane.f32.xlu0 %v843
        %v845 = vpop.xlane.xlu0 %844
        %v846 = vrcp.pop %v845
        %v847 = vmul.f32 %v842, %v846
        %v848 = vpack.c.bf16 %v847, %v847
        %849 = vrot.lane.b32.xlu0 %v566, 96
        %v850 = vpop.permute.xlu0 %849
        %v852 = vsel %vm614, %v848, 0
        %v855 = vsel %vm630, %v850, 0
        %857 = vmatprep.subr.bf16.mxu0 0
        %858 = vmatpush1.bf16.msra.mxu0 0
        %859 = vmatprep.subr.bf16.mxu0 0
        %860 = vmatpush1.bf16.msra.mxu0 0
        %861 = vmatprep.subr.bf16.mxu0 0
        %862 = vmatpush1.bf16.msra.mxu0 0
        %863 = vmatprep.subr.bf16.mxu0 0
        %864 = vmatpush1.bf16.msra.mxu0 0
        %865 = vmatprep.subr.bf16.mxu0 0
        %866 = vmatpush1.bf16.msra.mxu0 0
        %867 = vmatprep.subr.bf16.mxu0 0
        %868 = vmatpush1.bf16.msra.mxu0 0
        %869 = vmatprep.subr.bf16.mxu0 0
        %870 = vmatpush1.bf16.msra.mxu0 0
        %871 = vmatprep.subr.bf16.mxu0 0
        %872 = vmatpush1.bf16.msra.mxu0 %v855
        %873 = vmatprep.subr.bf16.mxu0 0
        %874 = vmatpush2.bf16.msra.mxu0 0
        %875 = vmatprep.subr.bf16.mxu0 0
        %876 = vmatpush2.bf16.msra.mxu0 0
        %877 = vmatprep.subr.bf16.mxu0 0
        %878 = vmatpush2.bf16.msra.mxu0 0
        %879 = vmatprep.subr.bf16.mxu0 0
        %880 = vmatpush2.bf16.msra.mxu0 0
        %881 = vmatprep.subr.bf16.mxu0 0
        %882 = vmatpush2.bf16.msra.mxu0 0
        %883 = vmatprep.subr.bf16.mxu0 0
        %884 = vmatpush2.bf16.msra.mxu0 0
        %885 = vmatprep.subr.bf16.mxu0 0
        %886 = vmatpush2.bf16.msra.mxu0 0
        %887 = vmatprep.subr.bf16.mxu0 0
        %888 = vmatpush2.bf16.msra.mxu0 0
        %889 = vmatprep.mubr.bf16.mxu0 0
        %890 = vmatmul.mubr.bf16.gmra.mxu0 %v852
        %v891 = vpop.f32.mrf.mxu0
        %v892 = vadd.f32 0.0, %v891
        %v893 = vpop.f32.mrf.mxu0
        %v894 = vpop.f32.mrf.mxu0
        %v895 = vpop.f32.mrf.mxu0
        %896 = vdwg.mxu0
        %897 = vrot.lane.b32.xlu0 %v564, 80
        %v898 = vpop.permute.xlu0 %897
        %899 = vrot.lane.b32.xlu0 %v565, 80
        %v900 = vpop.permute.xlu0 %899
        %v902 = vsel %vm567, %v898, 0
        %v905 = vsel %vm567, %v900, 0
        %907 = vmatprep.subr.bf16.mxu0 0
        %908 = vmatpush1.bf16.xpose.msra.mxu0 0
        %909 = vmatprep.subr.bf16.mxu0 0
        %910 = vmatpush1.bf16.xpose.msra.mxu0 0
        %911 = vmatprep.subr.bf16.mxu0 0
        %912 = vmatpush1.bf16.xpose.msra.mxu0 0
        %913 = vmatprep.subr.bf16.mxu0 0
        %914 = vmatpush1.bf16.xpose.msra.mxu0 0
        %915 = vmatprep.subr.bf16.mxu0 0
        %916 = vmatpush1.bf16.xpose.msra.mxu0 0
        %917 = vmatprep.subr.bf16.mxu0 0
        %918 = vmatpush1.bf16.xpose.msra.mxu0 0
        %919 = vmatprep.subr.bf16.mxu0 0
        %920 = vmatpush1.bf16.xpose.msra.mxu0 0
        %921 = vmatprep.subr.bf16.mxu0 0
        %922 = vmatpush1.bf16.xpose.msra.mxu0 %v905
        %923 = vmatprep.subr.bf16.mxu0 0
        %924 = vmatpush2.bf16.xpose.msra.mxu0 0
        %925 = vmatprep.subr.bf16.mxu0 0
        %926 = vmatpush2.bf16.xpose.msra.mxu0 0
        %927 = vmatprep.subr.bf16.mxu0 0
        %928 = vmatpush2.bf16.xpose.msra.mxu0 0
        %929 = vmatprep.subr.bf16.mxu0 0
        %930 = vmatpush2.bf16.xpose.msra.mxu0 0
        %931 = vmatprep.subr.bf16.mxu0 0
        %932 = vmatpush2.bf16.xpose.msra.mxu0 0
        %933 = vmatprep.subr.bf16.mxu0 0
        %934 = vmatpush2.bf16.xpose.msra.mxu0 0
        %935 = vmatprep.subr.bf16.mxu0 0
        %936 = vmatpush2.bf16.xpose.msra.mxu0 0
        %937 = vmatprep.subr.bf16.mxu0 0
        %938 = vmatpush2.bf16.xpose.msra.mxu0 0
        %939 = vmatprep.mubr.bf16.mxu0 0
        %940 = vmatmul.mubr.bf16.gmra.mxu0 %v902
        %v941 = vpop.f32.mrf.mxu0
        %v942 = vadd.f32 0.0, %v941
        %v943 = vpop.f32.mrf.mxu0
        %v944 = vpop.f32.mrf.mxu0
        %v945 = vpop.f32.mrf.mxu0
        %946 = vdwg.mxu0
        %v947 = vsel %vm614, %v942, -inf
        %948 = vmax.xlane.f32.xlu0 %v947
        %v949 = vpop.xlane.xlu0 %948
        %v950 = vsub.f32 %v942, %v949
        %v951 = vmul.f32 %v950, 1.442695
        %v952 = vpow.pop %v951
        %v953 = vsel %vm614, %v952, 0.0
        %954 = vadd.xlane.f32.xlu0 %v953
        %v955 = vpop.xlane.xlu0 %954
        %v956 = vrcp.pop %v955
        %v957 = vmul.f32 %v952, %v956
        %v958 = vpack.c.bf16 %v957, %v957
        %959 = vrot.lane.b32.xlu0 %v566, 80
        %v960 = vpop.permute.xlu0 %959
        %v962 = vsel %vm614, %v958, 0
        %v965 = vsel %vm630, %v960, 0
        %967 = vmatprep.subr.bf16.mxu0 0
        %968 = vmatpush1.bf16.msra.mxu0 0
        %969 = vmatprep.subr.bf16.mxu0 0
        %970 = vmatpush1.bf16.msra.mxu0 0
        %971 = vmatprep.subr.bf16.mxu0 0
        %972 = vmatpush1.bf16.msra.mxu0 0
        %973 = vmatprep.subr.bf16.mxu0 0
        %974 = vmatpush1.bf16.msra.mxu0 0
        %975 = vmatprep.subr.bf16.mxu0 0
        %976 = vmatpush1.bf16.msra.mxu0 0
        %977 = vmatprep.subr.bf16.mxu0 0
        %978 = vmatpush1.bf16.msra.mxu0 0
        %979 = vmatprep.subr.bf16.mxu0 0
        %980 = vmatpush1.bf16.msra.mxu0 0
        %981 = vmatprep.subr.bf16.mxu0 0
        %982 = vmatpush1.bf16.msra.mxu0 %v965
        %983 = vmatprep.subr.bf16.mxu0 0
        %984 = vmatpush2.bf16.msra.mxu0 0
        %985 = vmatprep.subr.bf16.mxu0 0
        %986 = vmatpush2.bf16.msra.mxu0 0
        %987 = vmatprep.subr.bf16.mxu0 0
        %988 = vmatpush2.bf16.msra.mxu0 0
        %989 = vmatprep.subr.bf16.mxu0 0
        %990 = vmatpush2.bf16.msra.mxu0 0
        %991 = vmatprep.subr.bf16.mxu0 0
        %992 = vmatpush2.bf16.msra.mxu0 0
        %993 = vmatprep.subr.bf16.mxu0 0
        %994 = vmatpush2.bf16.msra.mxu0 0
        %995 = vmatprep.subr.bf16.mxu0 0
        %996 = vmatpush2.bf16.msra.mxu0 0
        %997 = vmatprep.subr.bf16.mxu0 0
        %998 = vmatpush2.bf16.msra.mxu0 0
        %999 = vmatprep.mubr.bf16.mxu0 0
        %1000 = vmatmul.mubr.bf16.gmra.mxu0 %v962
        %v1001 = vpop.f32.mrf.mxu0
        %v1002 = vadd.f32 0.0, %v1001
        %v1003 = vpop.f32.mrf.mxu0
        %v1004 = vpop.f32.mrf.mxu0
        %v1005 = vpop.f32.mrf.mxu0
        %1006 = vdwg.mxu0
        %1008 = vrot.lane.b32.xlu0 %v782, 16
        %v1009 = vpop.permute.xlu0 %1008
        %1012 = vrot.lane.b32.xlu0 %v892, 32
        %v1013 = vpop.permute.xlu0 %1012
        %1016 = vrot.lane.b32.xlu0 %v1002, 48
        %v1017 = vpop.permute.xlu0 %1016
        %v1019 = vsel %vm567, %v669, %v1009
        %v1020 = vsel %vm388, %v1019, %v1013
        %vm1021 = vcmask 392192
        %v1022 = vsel %vm1021, %v1020, %v1017
        %v1023 = vpack.c.bf16 %v1022, %v1022
        %v1024 = vld [vmem:[%s7] sm:$0xf]
        %v1025 = vld [vmem:[%s7 + $0x4] sm:$0xf]
        %v1026 = vld [vmem:[%s7 + $0x8] sm:$0xf]
        %v1027 = vld [vmem:[%s7 + $0xc] sm:$0xf]
        %v1028 = vld [vmem:[%s7 + $0x10] sm:$0xf]
        %v1029 = vld [vmem:[%s7 + $0x14] sm:$0xf]
        %v1030 = vld [vmem:[%s7 + $0x18] sm:$0xf]
        %v1031 = vld [vmem:[%s7 + $0x1c] sm:$0xf]
        %v1032 = vld [vmem:[%s8] sm:$0x1]
        %v1034 = vlaneseq
        %v1035 = vshrl.u32 %v1034, 7
        %v1036 = vsub.s32 0, %v1035
        %v1037 = vrot.slane %v1032, %v1036
        %v1047 = vunpack.c.l.b16 %v1024
        %v1048 = vunpack.c.l.b16 %v1025
        %v1049 = vunpack.c.l.b16 %v1026
        %v1050 = vunpack.c.l.b16 %v1027
        %v1051 = vunpack.c.l.b16 %v1028
        %v1052 = vunpack.c.l.b16 %v1029
        %v1053 = vunpack.c.l.b16 %v1030
        %v1054 = vunpack.c.l.b16 %v1031
        %v1055 = vpack.c.b16 %v1048, %v1047
        %v1056 = vpack.c.b16 %v1050, %v1049
        %v1057 = vpack.c.b16 %v1052, %v1051
        %v1058 = vpack.c.b16 %v1054, %v1053
        %vm1063 = vcmask 523264
        %v1065 = vsel %vm1063, %v1023, 0
        %1067 = vmatprep.subr.bf16.mxu0 0
        %1068 = vmatpush1.bf16.msra.mxu0 0
        %1069 = vmatprep.subr.bf16.mxu0 0
        %1070 = vmatpush1.bf16.msra.mxu0 0
        %1071 = vmatprep.subr.bf16.mxu0 0
        %1072 = vmatpush1.bf16.msra.mxu0 0
        %1073 = vmatprep.subr.bf16.mxu0 0
        %1074 = vmatpush1.bf16.msra.mxu0 0
        %1075 = vmatprep.subr.bf16.mxu0 0
        %1076 = vmatpush1.bf16.msra.mxu0 %v1058
        %1077 = vmatprep.subr.bf16.mxu0 0
        %1078 = vmatpush1.bf16.msra.mxu0 %v1057
        %1079 = vmatprep.subr.bf16.mxu0 0
        %1080 = vmatpush1.bf16.msra.mxu0 %v1056
        %1081 = vmatprep.subr.bf16.mxu0 0
        %1082 = vmatpush1.bf16.msra.mxu0 %v1055
        %1083 = vmatprep.subr.bf16.mxu0 0
        %1084 = vmatpush2.bf16.msra.mxu0 0
        %1085 = vmatprep.subr.bf16.mxu0 0
        %1086 = vmatpush2.bf16.msra.mxu0 0
        %1087 = vmatprep.subr.bf16.mxu0 0
        %1088 = vmatpush2.bf16.msra.mxu0 0
        %1089 = vmatprep.subr.bf16.mxu0 0
        %1090 = vmatpush2.bf16.msra.mxu0 0
        %1091 = vmatprep.subr.bf16.mxu0 0
        %1092 = vmatpush2.bf16.msra.mxu0 0
        %1093 = vmatprep.subr.bf16.mxu0 0
        %1094 = vmatpush2.bf16.msra.mxu0 0
        %1095 = vmatprep.subr.bf16.mxu0 0
        %1096 = vmatpush2.bf16.msra.mxu0 0
        %1097 = vmatprep.subr.bf16.mxu0 0
        %1098 = vmatpush2.bf16.msra.mxu0 0
        %1099 = vmatprep.mubr.bf16.mxu0 0
        %1100 = vmatmul.mubr.bf16.gmra.mxu0 %v1065
        %v1101 = vpop.f32.mrf.mxu0
        %v1102 = vadd.f32 %v1037, %v1101
        %v1103 = vpop.f32.mrf.mxu0
        %v1104 = vpop.f32.mrf.mxu0
        %v1105 = vpop.f32.mrf.mxu0
        %1106 = vdwg.mxu0
        %1107 = vst.msk [vmem:[%s355] sm:$0xff] %vm388, %v1102
        %s1108 = sand.u32 %s227, 1
        %s1109 = scalar_lea.sflag [#allocation4], %s1108
        %s1110 = sand.u32 %s227, 1
        %s1111 = smul.addr %s1110, 8
        %s1112 = scalar_lea.vmem [#allocation7], %s1111
        // Predicated region
        $region65: #{tpu_custom_call.1} parent=55 // pred_check
          %p1113 = pneg %p237
        $region66: #{tpu_custom_call.1} parent=55 // pred_check_branch
          %1115 = sbr.rel (%p1113) target = $region68
        $region67: #{tpu_custom_call.1} parent=55 // pred_region
          %s1117 = ssub.s32 128, 128
          %1118 = vsyncadd %s1109, %s1117
          %s1119 = smul.addr %s25, 128
          %s1120 = scalar_lea.hbm %s9, %s1119
          %s1122 = sshll.u32 %s1112, 4
          %s1123 = int_to_ptr.vmem [resolvable:$true] %s1122
          %1125 = dma.vmem_to_hbm [thread:$0]  %s1123, 128, %s1120, %s1109
        $region68: #{tpu_custom_call.1} parent=55 // pred_fallthru
          _
      $region56: #{tpu_custom_call.1} parent=5 // pred_fallthru
        _
      %p1126 = scmp.le.s32.totalorder 2, %s20
      // Predicated region
      $region69: #{tpu_custom_call.1} parent=5 // pred_check
        %p1127 = pneg %p1126
      $region70: #{tpu_custom_call.1} parent=5 // pred_check_branch
        %1129 = sbr.rel (%p1127) target = $region72
      $region71: #{tpu_custom_call.1} parent=5 // pred_region
        %s1130 = ssub.s32 %s20, 2
        // Predicated region
        $region73: #{tpu_custom_call.1} parent=71 // pred_check
          %p1131 = pneg %p243
        $region74: #{tpu_custom_call.1} parent=71 // pred_check_branch
          %1133 = sbr.rel (%p1131) target = $region76
        $region75: #{tpu_custom_call.1} parent=71 // pred_region
          %s1134 = sand.u32 %s228, 1
          %s1135 = scalar_lea.sflag [#allocation4], %s1134
          %s1136 = sand.u32 %s228, 1
          %s1137 = smul.addr %s1136, 8
          %s1138 = scalar_lea.vmem [#allocation7], %s1137
          %1139 = dma.done %s1135, 128
        $region76: #{tpu_custom_call.1} parent=71 // pred_fallthru
          _
      $region72: #{tpu_custom_call.1} parent=5 // pred_fallthru
        _
    $region6: #{tpu_custom_call.1} parent=1 // loop_footer
      %s24 = sadd.s32 1, %s20
    $region7: #{tpu_custom_call.1} parent=1 // loop_footer_branch
      %19 = sbr.rel target = $region3
    $region8: #{tpu_custom_call.1} parent=1 // loop_exit
      _
    %1140 = vsyncpa [#allocation3], 1
    %s1141 = scalar_lea.sflag [#allocation3], 1
    %1142 = vsyncpa %s1141, 1
    %1143 = vsyncpa [#allocation6], 1
    %1144 = vsyncpa [#allocation4], 1
    %s1145 = scalar_lea.sflag [#allocation4], 1
    %1146 = vsyncpa %s1145, 1

</llo_original>
